<compile_context>
chip_gen: v7x
topology: tpu7x:2x2x1
jax: 0.10.0
libtpu: 0.0.40
codegen_flags: <defaults>
</compile_context>

<pallas_src>
import jax
import jax.numpy as jnp
from jax.experimental import pallas as pl
from jax.experimental.pallas import tpu as pltpu


def critic_mlp_kernel(obs_ref, act_ref, w1o_ref, w1a_ref, b1_ref,
                      w2_ref, b2_ref, w3_ref, b3_ref, out_ref):
    """One batch tile of: relu(x@W1+b1) -> relu(.@W2+b2) -> .@w3+b3 -> [TB, 1]."""
    # Layer 1: x @ W1 == obs @ W1_obs + actions @ W1_act (W1 split by rows at init,
    # so the column-rearranging concat never materializes in HBM).
    h1 = jnp.dot(obs_ref[...], w1o_ref[...], preferred_element_type=jnp.float32)
    h1 = h1 + jnp.dot(act_ref[...], w1a_ref[...], preferred_element_type=jnp.float32)
    h1 = jnp.maximum(h1 + b1_ref[...], 0.0)

    # Layer 2.
    h2 = jnp.dot(h1.astype(w2_ref.dtype), w2_ref[...],
                 preferred_element_type=jnp.float32)
    h2 = jnp.maximum(h2 + b2_ref[...], 0.0)

    # Final Linear(bb_out, 1): VPU multiply + cross-lane reduction instead of an
    # MXU pass whose result would be 1/128 useful lanes.
    v = jnp.sum(h2 * w3_ref[...], axis=-1, keepdims=True) + b3_ref[...]
    out_ref[...] = v.astype(out_ref.dtype)


def init_params(key, in_dim, hidden_dim, bb_out_dim):
    """Deterministic synthetic weights for the backbone MLP + `last` linear."""
    ks = jax.random.split(key, 6)
    s1 = 1.0 / jnp.sqrt(in_dim)
    s2 = 1.0 / jnp.sqrt(hidden_dim)
    s3 = 1.0 / jnp.sqrt(bb_out_dim)
    w1 = jax.random.uniform(ks[0], (in_dim, hidden_dim), jnp.float32, -s1, s1)
    b1 = jax.random.uniform(ks[1], (1, hidden_dim), jnp.float32, -s1, s1)
    w2 = jax.random.uniform(ks[2], (hidden_dim, bb_out_dim), jnp.float32, -s2, s2)
    b2 = jax.random.uniform(ks[3], (1, bb_out_dim), jnp.float32, -s2, s2)
    w3 = jax.random.uniform(ks[4], (bb_out_dim, 1), jnp.float32, -s3, s3)
    b3 = jax.random.uniform(ks[5], (1, 1), jnp.float32, -s3, s3)
    return (w1, b1, w2, b2, w3, b3)


def prepare_params(params, dense_dim, act_dim, compute_dtype=jnp.float32):
    """Split W1 by rows once (obs rows vs action rows) and cast matmul weights.

    x = [obs_dense, actions, obs_id]  =>  x@W1 = obs@W1_obs + actions@W1_act,
    where W1_obs stacks rows [:dense_dim] and [dense_dim+act_dim:] (obs column order).
    """
    w1, b1, w2, b2, w3, b3 = params
    w1_obs = jnp.concatenate([w1[:dense_dim], w1[dense_dim + act_dim:]], axis=0)
    w1_act = w1[dense_dim:dense_dim + act_dim]
    return (
        w1_obs.astype(compute_dtype),
        w1_act.astype(compute_dtype),
        b1.astype(jnp.float32),
        w2.astype(compute_dtype),
        b2.astype(jnp.float32),
        w3.reshape(1, -1).astype(jnp.float32),   # row vector for the VPU reduction
        b3.astype(jnp.float32),
    )


def critic_id_forward(obs, actions, prepared, *, dense_dim=11, block_batch=512,
                      compute_dtype=jnp.float32):
    """JAX/Pallas equivalent of CriticID.forward.

    For very large batches on v6e/v7x, pass compute_dtype=jnp.bfloat16 (weights must
    be prepared with the same dtype); accumulation stays in float32.
    """
    assert block_batch % 8 == 0
    w1_obs, w1_act, b1, w2, b2, w3_row, b3 = prepared

    B = obs.shape[0]
    obs_c = obs.astype(compute_dtype)
    actions_flat = actions.reshape(B, -1).astype(compute_dtype)
    obs_dim = obs_c.shape[1]
    act_dim = actions_flat.shape[1]
    hidden_dim = w1_obs.shape[1]
    bb_out_dim = w2.shape[1]

    # Batch tile: multiple of 8, capped at block_batch; pad B up to a tile multiple.
    tb = min(block_batch, ((B + 7) // 8) * 8)
    n_tiles = pl.cdiv(B, tb)
    b_pad = n_tiles * tb
    if b_pad != B:
        pad = b_pad - B
        obs_c = jnp.pad(obs_c, ((0, pad), (0, 0)))
        actions_flat = jnp.pad(actions_flat, ((0, pad), (0, 0)))

    in_dim = obs_dim + act_dim
    weight_bytes = sum(int(w.size) * w.dtype.itemsize
                       for w in (w1_obs, w1_act, b1, w2, b2, w3_row, b3))
    cost = pl.CostEstimate(
        flops=2 * b_pad * (in_dim * hidden_dim + hidden_dim * bb_out_dim + bb_out_dim),
        transcendentals=0,
        bytes_accessed=(int(obs_c.size) * obs_c.dtype.itemsize
                        + int(actions_flat.size) * actions_flat.dtype.itemsize
                        + weight_bytes + b_pad * 4),
    )

    grid_spec = pltpu.PrefetchScalarGridSpec(
        num_scalar_prefetch=0,
        grid=(n_tiles,),
        in_specs=[
            pl.BlockSpec((tb, obs_dim), lambda i: (i, 0)),      # batch-tiled
            pl.BlockSpec((tb, act_dim), lambda i: (i, 0)),      # batch-tiled
            pl.BlockSpec(w1_obs.shape, lambda i: (0, 0)),       # grid-invariant (resident)
            pl.BlockSpec(w1_act.shape, lambda i: (0, 0)),
            pl.BlockSpec(b1.shape, lambda i: (0, 0)),
            pl.BlockSpec(w2.shape, lambda i: (0, 0)),
            pl.BlockSpec(b2.shape, lambda i: (0, 0)),
            pl.BlockSpec(w3_row.shape, lambda i: (0, 0)),
            pl.BlockSpec(b3.shape, lambda i: (0, 0)),
        ],
        out_specs=pl.BlockSpec((tb, 1), lambda i: (i, 0)),
    )

    values = pl.pallas_call(
        critic_mlp_kernel,
        out_shape=jax.ShapeDtypeStruct((b_pad, 1), jnp.float32),
        grid_spec=grid_spec,
        compiler_params=pltpu.CompilerParams(
            dimension_semantics=("parallel",),       # batch axis shards across TCs on v7x
            vmem_limit_bytes=32 * 1024 * 1024,       # plenty of headroom; fits v7x scoped VMEM
        ),
        cost_estimate=cost,
    )(obs_c, actions_flat, w1_obs, w1_act, b1, w2, b2, w3_row, b3)

    return values[:B]


def critic_id_forward_ref(obs, actions, params, dense_dim=11):
    """Pure-JAX reference for correctness checking."""
    B = obs.shape[0]
    actions_flat = actions.reshape(B, -1)
    x = jnp.concatenate(
        [obs[:, :dense_dim], actions_flat, obs[:, dense_dim:]], axis=1
    ).astype(jnp.float32)
    w1, b1, w2, b2, w3, b3 = params
    h1 = jnp.maximum(x @ w1 + b1, 0.0)
    h2 = jnp.maximum(h1 @ w2 + b2, 0.0)
    return h2 @ w3 + b3


if __name__ == "__main__":
    # Shapes consistent with the module defaults (dense_dim=11, bb_out_dim=50).
    dense_dim = 11
    id_dim = 5
    obs_dim = dense_dim + id_dim           # 16
    act_inner = (2, 3)                     # flattened to 6 action features
    act_dim = act_inner[0] * act_inner[1]
    in_dim = dense_dim + act_dim + id_dim  # 22 -> backbone input
    hidden_dim = 32
    bb_out_dim = 50

    key = jax.random.PRNGKey(0)
    k_obs, k_act, k_par, k_obs2, k_act2 = jax.random.split(key, 5)
    params = init_params(k_par, in_dim, hidden_dim, bb_out_dim)
    prepared = prepare_params(params, dense_dim, act_dim)  # f32 compute path

    # Small batch (single tile).
    B = 8
    obs = jax.random.normal(k_obs, (B, obs_dim), jnp.float32)
    actions = jax.random.normal(k_act, (B,) + act_inner, jnp.float32)
    values = jax.block_until_ready(
        critic_id_forward(obs, actions, prepared, dense_dim=dense_dim))
    ref = critic_id_forward_ref(obs, actions, params, dense_dim=dense_dim)
    assert values.shape == (B, 1)
    # Tolerance covers the different final-layer path (exact f32 VPU reduce in the
    # kernel vs default-precision dot in the reference); real bugs are O(0.1+).
    assert jnp.allclose(values, ref, atol=2e-3, rtol=2e-3), "mismatch vs reference (B=8)"

    # Larger batch, not a multiple of the tile -> exercises the grid + padding path.
    B2 = 300
    obs2 = jax.random.normal(k_obs2, (B2, obs_dim), jnp.float32)
    actions2 = jax.random.normal(k_act2, (B2,) + act_inner, jnp.float32)
    values2 = jax.block_until_ready(
        critic_id_forward(obs2, actions2, prepared, dense_dim=dense_dim, block_batch=256))
    ref2 = critic_id_forward_ref(obs2, actions2, params, dense_dim=dense_dim)
    assert values2.shape == (B2, 1)
    assert jnp.allclose(values2, ref2, atol=2e-3, rtol=2e-3), "mismatch vs reference (B=300)"

    print("KERNEL_OK")
</pallas_src>

<mosaic_0001>
module attributes {stable_mosaic.version = 11 : i64} {
  func.func @critic_mlp_kernel(%arg0: i32, %arg1: memref<8x16xf32, #tpu.memory_space<vmem>>, %arg2: memref<8x6xf32, #tpu.memory_space<vmem>>, %arg3: memref<16x32xf32, #tpu.memory_space<vmem>>, %arg4: memref<6x32xf32, #tpu.memory_space<vmem>>, %arg5: memref<1x32xf32, #tpu.memory_space<vmem>>, %arg6: memref<32x50xf32, #tpu.memory_space<vmem>>, %arg7: memref<1x50xf32, #tpu.memory_space<vmem>>, %arg8: memref<1x50xf32, #tpu.memory_space<vmem>>, %arg9: memref<1x1xf32, #tpu.memory_space<vmem>>, %arg10: memref<8x1xf32, #tpu.memory_space<vmem>>) attributes {dimension_semantics = [#tpu.dimension_semantics<parallel>], iteration_bounds = array<i64: 1>, scalar_prefetch = 0 : i64, scratch_operands = 0 : i64, tpu.core_type = #tpu.core_type<tc>, window_params = [{transform_indices = @transform_0, window_bounds = array<i64: 8, 16>}, {transform_indices = @transform_1, window_bounds = array<i64: 8, 6>}, {pipeline_mode = #tpu.pipeline_mode<synchronous>, transform_indices = @transform_2, window_bounds = array<i64: 16, 32>}, {pipeline_mode = #tpu.pipeline_mode<synchronous>, transform_indices = @transform_3, window_bounds = array<i64: 6, 32>}, {pipeline_mode = #tpu.pipeline_mode<synchronous>, transform_indices = @transform_4, window_bounds = array<i64: 1, 32>}, {pipeline_mode = #tpu.pipeline_mode<synchronous>, transform_indices = @transform_5, window_bounds = array<i64: 32, 50>}, {pipeline_mode = #tpu.pipeline_mode<synchronous>, transform_indices = @transform_6, window_bounds = array<i64: 1, 50>}, {pipeline_mode = #tpu.pipeline_mode<synchronous>, transform_indices = @transform_7, window_bounds = array<i64: 1, 50>}, {pipeline_mode = #tpu.pipeline_mode<synchronous>, transform_indices = @transform_8, window_bounds = array<i64: 1, 1>}, {transform_indices = @transform_9, window_bounds = array<i64: 8, 1>}]} {
    %c0 = arith.constant 0 : index
    %c0_0 = arith.constant 0 : index
    %0 = vector.load %arg1[%c0, %c0_0] : memref<8x16xf32, #tpu.memory_space<vmem>>, vector<8x16xf32>
    %c0_1 = arith.constant 0 : index
    %c0_2 = arith.constant 0 : index
    %1 = vector.load %arg3[%c0_1, %c0_2] : memref<16x32xf32, #tpu.memory_space<vmem>>, vector<16x32xf32>
    %cst = arith.constant dense<0.000000e+00> : vector<8x32xf32>
    %2 = tpu.matmul %0, %1, %cst {dimension_numbers = #tpu.dot_dimension_numbers<[1], [0], [0], [1], [0, 0, 1, 1], [], []>} : vector<8x16xf32>, vector<16x32xf32>, vector<8x32xf32> -> vector<8x32xf32>
    %c0_3 = arith.constant 0 : index
    %c0_4 = arith.constant 0 : index
    %3 = vector.load %arg2[%c0_3, %c0_4] : memref<8x6xf32, #tpu.memory_space<vmem>>, vector<8x6xf32>
    %c0_5 = arith.constant 0 : index
    %c0_6 = arith.constant 0 : index
    %4 = vector.load %arg4[%c0_5, %c0_6] : memref<6x32xf32, #tpu.memory_space<vmem>>, vector<6x32xf32>
    %cst_7 = arith.constant dense<0.000000e+00> : vector<8x32xf32>
    %5 = tpu.matmul %3, %4, %cst_7 {dimension_numbers = #tpu.dot_dimension_numbers<[1], [0], [0], [1], [0, 0, 1, 1], [], []>} : vector<8x6xf32>, vector<6x32xf32>, vector<8x32xf32> -> vector<8x32xf32>
    %6 = arith.addf %2, %5 : vector<8x32xf32>
    %c0_8 = arith.constant 0 : index
    %c0_9 = arith.constant 0 : index
    %7 = vector.load %arg5[%c0_8, %c0_9] : memref<1x32xf32, #tpu.memory_space<vmem>>, vector<1x32xf32>
    %8 = vector.broadcast %7 : vector<1x32xf32> to vector<8x32xf32>
    %9 = arith.addf %6, %8 : vector<8x32xf32>
    %cst_10 = arith.constant 0.000000e+00 : f32
    %10 = vector.broadcast %cst_10 : f32 to vector<8x32xf32>
    %11 = arith.maximumf %9, %10 : vector<8x32xf32>
    %c0_11 = arith.constant 0 : index
    %c0_12 = arith.constant 0 : index
    %12 = vector.load %arg6[%c0_11, %c0_12] : memref<32x50xf32, #tpu.memory_space<vmem>>, vector<32x50xf32>
    %cst_13 = arith.constant dense<0.000000e+00> : vector<8x50xf32>
    %13 = tpu.matmul %11, %12, %cst_13 {dimension_numbers = #tpu.dot_dimension_numbers<[1], [0], [0], [1], [0, 0, 1, 1], [], []>} : vector<8x32xf32>, vector<32x50xf32>, vector<8x50xf32> -> vector<8x50xf32>
    %c0_14 = arith.constant 0 : index
    %c0_15 = arith.constant 0 : index
    %14 = vector.load %arg7[%c0_14, %c0_15] : memref<1x50xf32, #tpu.memory_space<vmem>>, vector<1x50xf32>
    %15 = vector.broadcast %14 : vector<1x50xf32> to vector<8x50xf32>
    %16 = arith.addf %13, %15 : vector<8x50xf32>
    %cst_16 = arith.constant 0.000000e+00 : f32
    %17 = vector.broadcast %cst_16 : f32 to vector<8x50xf32>
    %18 = arith.maximumf %16, %17 : vector<8x50xf32>
    %c0_17 = arith.constant 0 : index
    %c0_18 = arith.constant 0 : index
    %19 = vector.load %arg8[%c0_17, %c0_18] : memref<1x50xf32, #tpu.memory_space<vmem>>, vector<1x50xf32>
    %20 = vector.broadcast %19 : vector<1x50xf32> to vector<8x50xf32>
    %21 = arith.mulf %18, %20 : vector<8x50xf32>
    %cst_19 = arith.constant dense<0.000000e+00> : vector<8xf32>
    %22 = vector.multi_reduction <add>, %21, %cst_19 [1] : vector<8x50xf32> to vector<8xf32>
    %23 = vector.shape_cast %22 : vector<8xf32> to vector<8x1xf32>
    %c0_20 = arith.constant 0 : index
    %c0_21 = arith.constant 0 : index
    %24 = vector.load %arg9[%c0_20, %c0_21] : memref<1x1xf32, #tpu.memory_space<vmem>>, vector<1x1xf32>
    %25 = vector.broadcast %24 : vector<1x1xf32> to vector<8x1xf32>
    %26 = arith.addf %23, %25 : vector<8x1xf32>
    %c0_22 = arith.constant 0 : index
    %c0_23 = arith.constant 0 : index
    %27 = vector.load %arg10[%c0_22, %c0_23] : memref<8x1xf32, #tpu.memory_space<vmem>>, vector<8x1xf32>
    tpu.vector_store %arg10[%c0_22, %c0_23], %26 {strides = array<i32>} : memref<8x1xf32, #tpu.memory_space<vmem>>, vector<8x1xf32>,
    return
  }
  func.func @transform_0(%arg0: i32) -> (i32, i32) {
    %c0_i32 = arith.constant 0 : i32
    %c0_i32_0 = arith.constant 0 : i32
    return %arg0, %c0_i32 : i32, i32
  }
  func.func @transform_1(%arg0: i32) -> (i32, i32) {
    %c0_i32 = arith.constant 0 : i32
    %c0_i32_0 = arith.constant 0 : i32
    return %arg0, %c0_i32 : i32, i32
  }
  func.func @transform_2(%arg0: i32) -> (i32, i32) {
    %c0_i32 = arith.constant 0 : i32
    %c0_i32_0 = arith.constant 0 : i32
    %c0_i32_1 = arith.constant 0 : i32
    return %c0_i32, %c0_i32_0 : i32, i32
  }
  func.func @transform_3(%arg0: i32) -> (i32, i32) {
    %c0_i32 = arith.constant 0 : i32
    %c0_i32_0 = arith.constant 0 : i32
    %c0_i32_1 = arith.constant 0 : i32
    return %c0_i32, %c0_i32_0 : i32, i32
  }
  func.func @transform_4(%arg0: i32) -> (i32, i32) {
    %c0_i32 = arith.constant 0 : i32
    %c0_i32_0 = arith.constant 0 : i32
    %c0_i32_1 = arith.constant 0 : i32
    return %c0_i32, %c0_i32_0 : i32, i32
  }
  func.func @transform_5(%arg0: i32) -> (i32, i32) {
    %c0_i32 = arith.constant 0 : i32
    %c0_i32_0 = arith.constant 0 : i32
    %c0_i32_1 = arith.constant 0 : i32
    return %c0_i32, %c0_i32_0 : i32, i32
  }
  func.func @transform_6(%arg0: i32) -> (i32, i32) {
    %c0_i32 = arith.constant 0 : i32
    %c0_i32_0 = arith.constant 0 : i32
    %c0_i32_1 = arith.constant 0 : i32
    return %c0_i32, %c0_i32_0 : i32, i32
  }
  func.func @transform_7(%arg0: i32) -> (i32, i32) {
    %c0_i32 = arith.constant 0 : i32
    %c0_i32_0 = arith.constant 0 : i32
    %c0_i32_1 = arith.constant 0 : i32
    return %c0_i32, %c0_i32_0 : i32, i32
  }
  func.func @transform_8(%arg0: i32) -> (i32, i32) {
    %c0_i32 = arith.constant 0 : i32
    %c0_i32_0 = arith.constant 0 : i32
    %c0_i32_1 = arith.constant 0 : i32
    return %c0_i32, %c0_i32_0 : i32, i32
  }
  func.func @transform_9(%arg0: i32) -> (i32, i32) {
    %c0_i32 = arith.constant 0 : i32
    %c0_i32_0 = arith.constant 0 : i32
    return %arg0, %c0_i32 : i32, i32
  }
}

</mosaic_0001>

<llo_original>
// kernel: tpu_custom_call.1
$region0: #{tpu_custom_call.1}
  #allocation0 [shape = 'u32[]', space=smem, size = 0x4, offset = 0x4, fixed_abs, tag = 'smem constant byte address 0x4 - core index']
  #allocation1 [shape = 'u32[144,128]{1,0:T(1,128)}', space=vmem, size = 0x12000, scoped, tag = 'internal scratch']
  #allocation2 [shape = 'f32[1,1]{1,0:T(1,128)S(1)}', space=vmem, size = 0x200, scoped, tag = 'scoped memory for tpu_custom_call.1']
  %s0 = inlined_call_operand.hbm [shape: f32[8,16], index: 0, kind: input, shape index: {}]
  %s1 = inlined_call_operand.hbm [shape: f32[8,6], index: 1, kind: input, shape index: {}]
  %s2 = inlined_call_operand.hbm [shape: f32[16,32], index: 2, kind: input, shape index: {}]
  %s3 = inlined_call_operand.vmem [shape: f32[6,32], index: 3, kind: input, shape index: {}]
  %s4 = inlined_call_operand.vmem [shape: f32[1,32], index: 4, kind: input, shape index: {}]
  %s5 = inlined_call_operand.hbm [shape: f32[32,50], index: 5, kind: input, shape index: {}]
  %s6 = inlined_call_operand.vmem [shape: f32[1,50], index: 6, kind: input, shape index: {}]
  %s7 = inlined_call_operand.vmem [shape: f32[1,50], index: 7, kind: input, shape index: {}]
  %s8 = inlined_call_operand.<no memory space> [shape: f32[1,1], index: 8, kind: input, shape index: {}]
  %s9 = inlined_call_operand.vmem [shape: f32[8,1], index: 9, kind: output, shape index: {}]
  %s10 = sld [smem:[#allocation0]]
  $region62: #{tpu_custom_call.1} parent=0
    _
  %s12 = ssub.s32 1, %s10
  %s13 = scalar_select 0, %s12, %s10
  %v14 = vstv %s8
  %15 = vst [vmem:[#allocation2] sm:$0x1] %v14
  $region1: #{tpu_custom_call.1} parent=0
    #allocation3 [shape = 'u8[4096]{0}', space=vmem, size = 0x1000, scoped, tag = 'input window, operand 0, single buffered']
    #allocation4 [shape = 's32[1]{0}', space=sflag, size = 0x4, scoped, tag = 'scoped memory for tpu_custom_call.1']
    #allocation5 [shape = 'u8[4096]{0}', space=vmem, size = 0x1000, scoped, tag = 'input window, operand 1, single buffered']
    #allocation6 [shape = 's32[1]{0}', space=sflag, size = 0x4, scoped, tag = 'scoped memory for tpu_custom_call.1']
    #allocation7 [shape = 'u8[8192]{0}', space=vmem, size = 0x2000, scoped, tag = 'input window, operand 2, single buffered']
    #allocation8 [shape = 'u8[16384]{0}', space=vmem, size = 0x4000, scoped, tag = 'input window, operand 5, single buffered']
    #allocation9 [shape = 's32[1]{0}', space=sflag, size = 0x4, scoped, tag = 'scoped memory for tpu_custom_call.1']
    %16 = vsyncpa [#allocation4], 0
    %17 = vsyncpa [#allocation6], 0
    %18 = vsyncpa [#allocation9], 0
    // Predicated region
    $region2: #{tpu_custom_call.1} parent=1 // pred_check
      _
    $region3: #{tpu_custom_call.1} parent=1 // pred_check_branch
      %20 = sbr.rel (0) target = $region5
    $region4: #{tpu_custom_call.1} parent=1 // pred_region
      %s22 = ssub.s32 128, 128
      %23 = vsyncadd [#allocation4], %s22
      %s25 = sshll.u32 [#allocation3], 4
      %s26 = int_to_ptr.vmem [resolvable:$true] %s25
      %28 = dma.hbm_to_vmem [thread:$0]  %s0, 128, %s26, [#allocation4]
    $region5: #{tpu_custom_call.1} parent=1 // pred_fallthru
      _
    // Predicated region
    $region6: #{tpu_custom_call.1} parent=1 // pred_check
      _
    $region7: #{tpu_custom_call.1} parent=1 // pred_check_branch
      %30 = sbr.rel (0) target = $region9
    $region8: #{tpu_custom_call.1} parent=1 // pred_region
      %s32 = ssub.s32 128, 128
      %33 = vsyncadd [#allocation6], %s32
      %s35 = sshll.u32 [#allocation5], 4
      %s36 = int_to_ptr.vmem [resolvable:$true] %s35
      %38 = dma.hbm_to_vmem [thread:$0]  %s1, 128, %s36, [#allocation6]
    $region9: #{tpu_custom_call.1} parent=1 // pred_fallthru
      _
    // Predicated region
    $region10: #{tpu_custom_call.1} parent=1 // pred_check
      _
    $region11: #{tpu_custom_call.1} parent=1 // pred_check_branch
      %40 = sbr.rel (0) target = $region13
    $region12: #{tpu_custom_call.1} parent=1 // pred_region
      %s42 = ssub.s32 256, 256
      %43 = vsyncadd [#allocation6], %s42
      %s44 = sshll.u32 [#allocation7], 4
      %s45 = int_to_ptr.vmem [resolvable:$true] %s44
      %50 = dma.hbm_to_vmem [thread:$0]  %s2, 256, %s45, [#allocation6], 128, 128, 8
    $region13: #{tpu_custom_call.1} parent=1 // pred_fallthru
      _
    // Predicated region
    $region14: #{tpu_custom_call.1} parent=1 // pred_check
      _
    $region15: #{tpu_custom_call.1} parent=1 // pred_check_branch
      %52 = sbr.rel (0) target = $region17
    $region16: #{tpu_custom_call.1} parent=1 // pred_region
      _
    $region17: #{tpu_custom_call.1} parent=1 // pred_fallthru
      _
    // Predicated region
    $region18: #{tpu_custom_call.1} parent=1 // pred_check
      _
    $region19: #{tpu_custom_call.1} parent=1 // pred_check_branch
      %54 = sbr.rel (0) target = $region21
    $region20: #{tpu_custom_call.1} parent=1 // pred_region
      _
    $region21: #{tpu_custom_call.1} parent=1 // pred_fallthru
      _
    // Predicated region
    $region22: #{tpu_custom_call.1} parent=1 // pred_check
      _
    $region23: #{tpu_custom_call.1} parent=1 // pred_check_branch
      %56 = sbr.rel (0) target = $region25
    $region24: #{tpu_custom_call.1} parent=1 // pred_region
      %s58 = ssub.s32 512, 512
      %59 = vsyncadd [#allocation9], %s58
      %s60 = sshll.u32 [#allocation8], 4
      %s61 = int_to_ptr.vmem [resolvable:$true] %s60
      %66 = dma.hbm_to_vmem [thread:$0]  %s5, 512, %s61, [#allocation9], 128, 128, 8
    $region25: #{tpu_custom_call.1} parent=1 // pred_fallthru
      _
    // Predicated region
    $region26: #{tpu_custom_call.1} parent=1 // pred_check
      _
    $region27: #{tpu_custom_call.1} parent=1 // pred_check_branch
      %68 = sbr.rel (0) target = $region29
    $region28: #{tpu_custom_call.1} parent=1 // pred_region
      _
    $region29: #{tpu_custom_call.1} parent=1 // pred_fallthru
      _
    // Predicated region
    $region30: #{tpu_custom_call.1} parent=1 // pred_check
      _
    $region31: #{tpu_custom_call.1} parent=1 // pred_check_branch
      %70 = sbr.rel (0) target = $region33
    $region32: #{tpu_custom_call.1} parent=1 // pred_region
      _
    $region33: #{tpu_custom_call.1} parent=1 // pred_fallthru
      _
    // Predicated region
    $region34: #{tpu_custom_call.1} parent=1 // pred_check
      _
    $region35: #{tpu_custom_call.1} parent=1 // pred_check_branch
      %72 = sbr.rel (0) target = $region37
    $region36: #{tpu_custom_call.1} parent=1 // pred_region
      _
    $region37: #{tpu_custom_call.1} parent=1 // pred_fallthru
      _
    // Predicated region
    $region38: #{tpu_custom_call.1} parent=1 // pred_check
      _
    $region39: #{tpu_custom_call.1} parent=1 // pred_check_branch
      %74 = sbr.rel (0) target = $region41
    $region40: #{tpu_custom_call.1} parent=1 // pred_region
      %75 = dma.done [#allocation4], 128
    $region41: #{tpu_custom_call.1} parent=1 // pred_fallthru
      _
    // Predicated region
    $region42: #{tpu_custom_call.1} parent=1 // pred_check
      _
    $region43: #{tpu_custom_call.1} parent=1 // pred_check_branch
      %77 = sbr.rel (0) target = $region45
    $region44: #{tpu_custom_call.1} parent=1 // pred_region
      %78 = dma.done [#allocation6], 128
    $region45: #{tpu_custom_call.1} parent=1 // pred_fallthru
      _
    // Predicated region
    $region46: #{tpu_custom_call.1} parent=1 // pred_check
      _
    $region47: #{tpu_custom_call.1} parent=1 // pred_check_branch
      %80 = sbr.rel (0) target = $region49
    $region48: #{tpu_custom_call.1} parent=1 // pred_region
      %81 = dma.done [#allocation6], 256
    $region49: #{tpu_custom_call.1} parent=1 // pred_fallthru
      _
    // Predicated region
    $region50: #{tpu_custom_call.1} parent=1 // pred_check
      _
    $region51: #{tpu_custom_call.1} parent=1 // pred_check_branch
      %83 = sbr.rel (0) target = $region53
    $region52: #{tpu_custom_call.1} parent=1 // pred_region
      %84 = dma.done [#allocation9], 512
    $region53: #{tpu_custom_call.1} parent=1 // pred_fallthru
      _
    %v85 = vld [vmem:[#allocation3] sm:$0xff]
    %v86 = vld [vmem:[#allocation7] sm:$0xff]
    %v87 = vld [vmem:[#allocation7 + $0x8] sm:$0xff]
    %v88 = vld [vmem:[#allocation5] sm:$0xff]
    %v89 = vld [vmem:[%s3] sm:$0x3f]
    %vm90 = vcmask 48128
    %v92 = vsel %vm90, %v88, 0
    %vm94 = vcmask 1045504
    %v96 = vsel %vm94, %v89, 0
    %98 = vmatprep.subr.mxu0 0.0
    %99 = vmatpush1.msra.mxu0 %v96
    %100 = vmatprep.subr.mxu0 0.0
    %101 = vmatpush1.msra.mxu0 0.0
    %102 = vmatprep.subr.mxu0 0.0
    %103 = vmatpush1.msra.mxu0 0.0
    %104 = vmatprep.subr.mxu0 0.0
    %105 = vmatpush1.msra.mxu0 0.0
    %106 = vmatprep.subr.mxu0 0.0
    %107 = vmatpush1.msra.mxu0 0.0
    %108 = vmatprep.subr.mxu0 0.0
    %109 = vmatpush1.msra.mxu0 0.0
    %110 = vmatprep.subr.mxu0 0.0
    %111 = vmatpush1.msra.mxu0 0.0
    %112 = vmatprep.subr.mxu0 0.0
    %113 = vmatpush1.msra.mxu0 0.0
    %114 = vmatprep.subr.mxu0 0.0
    %115 = vmatpush1.msra.mxu0 0.0
    %116 = vmatprep.subr.mxu0 0.0
    %117 = vmatpush1.msra.mxu0 0.0
    %118 = vmatprep.subr.mxu0 0.0
    %119 = vmatpush1.msra.mxu0 0.0
    %120 = vmatprep.subr.mxu0 0.0
    %121 = vmatpush1.msra.mxu0 0.0
    %122 = vmatprep.subr.mxu0 0.0
    %123 = vmatpush1.msra.mxu0 0.0
    %124 = vmatprep.subr.mxu0 0.0
    %125 = vmatpush1.msra.mxu0 0.0
    %126 = vmatprep.subr.mxu0 0.0
    %127 = vmatpush1.msra.mxu0 0.0
    %128 = vmatprep.subr.mxu0 0.0
    %129 = vmatpush1.msra.mxu0 0.0
    %130 = vmatprep.subr.mxu0 0.0
    %131 = vmatpush1.msra.mxu0 0.0
    %132 = vmatprep.subr.mxu0 0.0
    %133 = vmatpush1.msra.mxu0 0.0
    %134 = vmatprep.subr.mxu0 0.0
    %135 = vmatpush1.msra.mxu0 0.0
    %136 = vmatprep.subr.mxu0 0.0
    %137 = vmatpush1.msra.mxu0 0.0
    %138 = vmatprep.subr.mxu0 0.0
    %139 = vmatpush1.msra.mxu0 0.0
    %140 = vmatprep.subr.mxu0 0.0
    %141 = vmatpush1.msra.mxu0 0.0
    %142 = vmatprep.subr.mxu0 0.0
    %143 = vmatpush1.msra.mxu0 0.0
    %144 = vmatprep.subr.mxu0 0.0
    %145 = vmatpush1.msra.mxu0 0.0
    %146 = vmatprep.subr.mxu0 0.0
    %147 = vmatpush1.msra.mxu0 0.0
    %148 = vmatprep.subr.mxu0 0.0
    %149 = vmatpush1.msra.mxu0 0.0
    %150 = vmatprep.subr.mxu0 0.0
    %151 = vmatpush1.msra.mxu0 0.0
    %152 = vmatprep.subr.mxu0 0.0
    %153 = vmatpush1.msra.mxu0 0.0
    %154 = vmatprep.subr.mxu0 0.0
    %155 = vmatpush1.msra.mxu0 0.0
    %156 = vmatprep.subr.mxu0 0.0
    %157 = vmatpush1.msra.mxu0 0.0
    %158 = vmatprep.subr.mxu0 0.0
    %159 = vmatpush1.msra.mxu0 0.0
    %160 = vmatprep.subr.mxu0 0.0
    %161 = vmatpush1.msra.mxu0 0.0
    %162 = vmatprep.mubr.f32.mxu0 0.0
    %163 = vmatmul.mubr.f32.gmra.mrb[0].mxu0 %v92
    %v164 = vpop.f32.mrb[0].mxu0
    %v165 = vadd.f32 0.0, %v164
    %v166 = vpop.f32.mrb[0].mxu0
    %167 = vdwg.mxu0
    %vm168 = vcmask 130048
    %v170 = vsel %vm168, %v85, 0
    %172 = vmatprep.subr.mxu0 0.0
    %173 = vmatpush1.msra.mxu0 %v86
    %174 = vmatprep.subr.mxu0 0.0
    %175 = vmatpush1.msra.mxu0 %v87
    %176 = vmatprep.subr.mxu0 0.0
    %177 = vmatpush1.msra.mxu0 0.0
    %178 = vmatprep.subr.mxu0 0.0
    %179 = vmatpush1.msra.mxu0 0.0
    %180 = vmatprep.subr.mxu0 0.0
    %181 = vmatpush1.msra.mxu0 0.0
    %182 = vmatprep.subr.mxu0 0.0
    %183 = vmatpush1.msra.mxu0 0.0
    %184 = vmatprep.subr.mxu0 0.0
    %185 = vmatpush1.msra.mxu0 0.0
    %186 = vmatprep.subr.mxu0 0.0
    %187 = vmatpush1.msra.mxu0 0.0
    %188 = vmatprep.subr.mxu0 0.0
    %189 = vmatpush1.msra.mxu0 0.0
    %190 = vmatprep.subr.mxu0 0.0
    %191 = vmatpush1.msra.mxu0 0.0
    %192 = vmatprep.subr.mxu0 0.0
    %193 = vmatpush1.msra.mxu0 0.0
    %194 = vmatprep.subr.mxu0 0.0
    %195 = vmatpush1.msra.mxu0 0.0
    %196 = vmatprep.subr.mxu0 0.0
    %197 = vmatpush1.msra.mxu0 0.0
    %198 = vmatprep.subr.mxu0 0.0
    %199 = vmatpush1.msra.mxu0 0.0
    %200 = vmatprep.subr.mxu0 0.0
    %201 = vmatpush1.msra.mxu0 0.0
    %202 = vmatprep.subr.mxu0 0.0
    %203 = vmatpush1.msra.mxu0 0.0
    %204 = vmatprep.subr.mxu0 0.0
    %205 = vmatpush1.msra.mxu0 0.0
    %206 = vmatprep.subr.mxu0 0.0
    %207 = vmatpush1.msra.mxu0 0.0
    %208 = vmatprep.subr.mxu0 0.0
    %209 = vmatpush1.msra.mxu0 0.0
    %210 = vmatprep.subr.mxu0 0.0
    %211 = vmatpush1.msra.mxu0 0.0
    %212 = vmatprep.subr.mxu0 0.0
    %213 = vmatpush1.msra.mxu0 0.0
    %214 = vmatprep.subr.mxu0 0.0
    %215 = vmatpush1.msra.mxu0 0.0
    %216 = vmatprep.subr.mxu0 0.0
    %217 = vmatpush1.msra.mxu0 0.0
    %218 = vmatprep.subr.mxu0 0.0
    %219 = vmatpush1.msra.mxu0 0.0
    %220 = vmatprep.subr.mxu0 0.0
    %221 = vmatpush1.msra.mxu0 0.0
    %222 = vmatprep.subr.mxu0 0.0
    %223 = vmatpush1.msra.mxu0 0.0
    %224 = vmatprep.subr.mxu0 0.0
    %225 = vmatpush1.msra.mxu0 0.0
    %226 = vmatprep.subr.mxu0 0.0
    %227 = vmatpush1.msra.mxu0 0.0
    %228 = vmatprep.subr.mxu0 0.0
    %229 = vmatpush1.msra.mxu0 0.0
    %230 = vmatprep.subr.mxu0 0.0
    %231 = vmatpush1.msra.mxu0 0.0
    %232 = vmatprep.subr.mxu0 0.0
    %233 = vmatpush1.msra.mxu0 0.0
    %234 = vmatprep.subr.mxu0 0.0
    %235 = vmatpush1.msra.mxu0 0.0
    %236 = vmatprep.mubr.f32.mxu0 0.0
    %237 = vmatmul.mubr.f32.gmra.mrb[0].mxu0 %v170
    %v238 = vpop.f32.mrb[0].mxu0
    %v239 = vadd.f32 %v165, %v238
    %v240 = vpop.f32.mrb[0].mxu0
    %241 = vdwg.mxu0
    %v242 = vld [vmem:[%s4] sm:$0x1]
    %v244 = vlaneseq
    %v245 = vshrl.u32 %v244, 7
    %v246 = vsub.s32 0, %v245
    %v247 = vrot.slane %v242, %v246
    %v249 = vadd.f32 %v239, %v247
    %v250 = vmax.f32 %v249, 0.0
    %v251 = vld [vmem:[#allocation8] sm:$0xff]
    %v252 = vld [vmem:[#allocation8 + $0x8] sm:$0xff]
    %v253 = vld [vmem:[#allocation8 + $0x10] sm:$0xff]
    %v254 = vld [vmem:[#allocation8 + $0x18] sm:$0xff]
    %v255 = vld [vmem:[%s6] sm:$0x1]
    %v257 = vlaneseq
    %v258 = vshrl.u32 %v257, 7
    %v259 = vsub.s32 0, %v258
    %v260 = vrot.slane %v255, %v259
    %vm262 = vcmask 261120
    %v264 = vsel %vm262, %v250, 0
    %266 = vmatprep.subr.mxu0 0.0
    %267 = vmatpush1.msra.mxu0 %v251
    %268 = vmatprep.subr.mxu0 0.0
    %269 = vmatpush1.msra.mxu0 %v252
    %270 = vmatprep.subr.mxu0 0.0
    %271 = vmatpush1.msra.mxu0 %v253
    %272 = vmatprep.subr.mxu0 0.0
    %273 = vmatpush1.msra.mxu0 %v254
    %274 = vmatprep.subr.mxu0 0.0
    %275 = vmatpush1.msra.mxu0 0.0
    %276 = vmatprep.subr.mxu0 0.0
    %277 = vmatpush1.msra.mxu0 0.0
    %278 = vmatprep.subr.mxu0 0.0
    %279 = vmatpush1.msra.mxu0 0.0
    %280 = vmatprep.subr.mxu0 0.0
    %281 = vmatpush1.msra.mxu0 0.0
    %282 = vmatprep.subr.mxu0 0.0
    %283 = vmatpush1.msra.mxu0 0.0
    %284 = vmatprep.subr.mxu0 0.0
    %285 = vmatpush1.msra.mxu0 0.0
    %286 = vmatprep.subr.mxu0 0.0
    %287 = vmatpush1.msra.mxu0 0.0
    %288 = vmatprep.subr.mxu0 0.0
    %289 = vmatpush1.msra.mxu0 0.0
    %290 = vmatprep.subr.mxu0 0.0
    %291 = vmatpush1.msra.mxu0 0.0
    %292 = vmatprep.subr.mxu0 0.0
    %293 = vmatpush1.msra.mxu0 0.0
    %294 = vmatprep.subr.mxu0 0.0
    %295 = vmatpush1.msra.mxu0 0.0
    %296 = vmatprep.subr.mxu0 0.0
    %297 = vmatpush1.msra.mxu0 0.0
    %298 = vmatprep.subr.mxu0 0.0
    %299 = vmatpush1.msra.mxu0 0.0
    %300 = vmatprep.subr.mxu0 0.0
    %301 = vmatpush1.msra.mxu0 0.0
    %302 = vmatprep.subr.mxu0 0.0
    %303 = vmatpush1.msra.mxu0 0.0
    %304 = vmatprep.subr.mxu0 0.0
    %305 = vmatpush1.msra.mxu0 0.0
    %306 = vmatprep.subr.mxu0 0.0
    %307 = vmatpush1.msra.mxu0 0.0
    %308 = vmatprep.subr.mxu0 0.0
    %309 = vmatpush1.msra.mxu0 0.0
    %310 = vmatprep.subr.mxu0 0.0
    %311 = vmatpush1.msra.mxu0 0.0
    %312 = vmatprep.subr.mxu0 0.0
    %313 = vmatpush1.msra.mxu0 0.0
    %314 = vmatprep.subr.mxu0 0.0
    %315 = vmatpush1.msra.mxu0 0.0
    %316 = vmatprep.subr.mxu0 0.0
    %317 = vmatpush1.msra.mxu0 0.0
    %318 = vmatprep.subr.mxu0 0.0
    %319 = vmatpush1.msra.mxu0 0.0
    %320 = vmatprep.subr.mxu0 0.0
    %321 = vmatpush1.msra.mxu0 0.0
    %322 = vmatprep.subr.mxu0 0.0
    %323 = vmatpush1.msra.mxu0 0.0
    %324 = vmatprep.subr.mxu0 0.0
    %325 = vmatpush1.msra.mxu0 0.0
    %326 = vmatprep.subr.mxu0 0.0
    %327 = vmatpush1.msra.mxu0 0.0
    %328 = vmatprep.subr.mxu0 0.0
    %329 = vmatpush1.msra.mxu0 0.0
    %330 = vmatprep.mubr.f32.mxu0 0.0
    %331 = vmatmul.mubr.f32.gmra.mrb[0].mxu0 %v264
    %v332 = vpop.f32.mrb[0].mxu0
    %v333 = vadd.f32 %v260, %v332
    %v334 = vpop.f32.mrb[0].mxu0
    %335 = vdwg.mxu0
    %v336 = vmax.f32 %v333, 0.0
    %v337 = vld [vmem:[%s7] sm:$0x1]
    %v339 = vlaneseq
    %v340 = vshrl.u32 %v339, 7
    %v341 = vsub.s32 0, %v340
    %v342 = vrot.slane %v337, %v341
    %v344 = vmul.f32 %v336, %v342
    %vm345 = vcmask 408576
    %v346 = vsel %vm345, %v344, 0.0
    %347 = vadd.xlane.f32.xlu0 %v346
    %v348 = vpop.xlane.xlu0 %347
    %v349 = vld [vmem:[#allocation2] sm:$0x1]
    %v351 = vlaneseq
    %v352 = vshrl.u32 %v351, 7
    %v353 = vsub.s32 0, %v352
    %v354 = vrot.slane %v349, %v353
    %v356 = vadd.f32 %v348, %v354
    %vm357 = vcmask 7168
    %358 = vst.msk [vmem:[%s9] sm:$0xff] %vm357, %v356
    // Predicated region
    $region54: #{tpu_custom_call.1} parent=1 // pred_check
      _
    $region55: #{tpu_custom_call.1} parent=1 // pred_check_branch
      %360 = sbr.rel (0) target = $region57
    $region56: #{tpu_custom_call.1} parent=1 // pred_region
      _
    $region57: #{tpu_custom_call.1} parent=1 // pred_fallthru
      _
    // Predicated region
    $region58: #{tpu_custom_call.1} parent=1 // pred_check
      _
    $region59: #{tpu_custom_call.1} parent=1 // pred_check_branch
      %362 = sbr.rel (0) target = $region61
    $region60: #{tpu_custom_call.1} parent=1 // pred_region
      _
    $region61: #{tpu_custom_call.1} parent=1 // pred_fallthru
      _
    %363 = vsyncpa [#allocation4], 1
    %364 = vsyncpa [#allocation6], 1
    %365 = vsyncpa [#allocation9], 1

</llo_original>
